<compile_context>
chip_gen: v7x
topology: tpu7x:2x2x1
jax: 0.10.0
libtpu: 0.0.40
codegen_flags: <defaults>
</compile_context>

<pallas_src>
import jax
import jax.numpy as jnp
from jax.experimental import pallas as pl
from jax.experimental.pallas import tpu as pltpu

# ---- fused-layout constants -------------------------------------------------
H_A = 200            # actor hidden width  (nn.Linear(s_dim, 200))
H_C = 100            # critic hidden width (nn.Linear(s_dim, 100))
H_A_PAD = 256        # actor hidden padded to multiple of 128
H_C_PAD = 128        # critic hidden padded to multiple of 128
H_TRUNK = H_A_PAD + H_C_PAD   # 384: fused trunk width, multiple of 128
N_OUT = 8            # narrow output slab; lanes 0/1/2 = mean / log_std / v
MAX_TILE_B = 2048    # batch tile cap (double-buffered working set ~3 MB VMEM)
SPLIT_MIN_ROWS = 512 # above this, force >=2 grid steps so v7x's 2 TCs share work


def _round_up(x: int, m: int) -> int:
    return ((x + m - 1) // m) * m


def _pick_batch_tiling(B: int):
    """Choose (tile_b, b_pad) for the batch axis.

    Prefers an 8-aligned tile that divides the (8-rounded) batch exactly so no
    wrapper-side jnp.pad copy of x is needed; falls back to padding only when
    the best exact divisor would be pathologically small.  For large batches
    the tile is capped at ~ceil(B/2) so the grid has >= 2 parallel steps
    (v7x megacore); small batches keep a single tile (v5e/v6e single-TC).
    """
    b8 = _round_up(max(B, 1), 8)
    cap = min(MAX_TILE_B, b8)
    if b8 >= SPLIT_MIN_ROWS:
        cap = min(cap, _round_up(-(-b8 // 2), 8))   # ensure >= 2 grid steps

    best_div = 8
    for t in range(cap, 7, -8):                     # cap is a multiple of 8
        if b8 % t == 0:
            best_div = t
            break

    if best_div * 2 >= cap:          # exact divisor is close enough to the cap
        return best_div, b8          # -> no padded rows, no extra x copy
    return cap, _round_up(b8, cap)   # pad: fewer grid steps beats tiny tiles


def make_acnet_forward(a_bound: float):
    """Builds the pallas_call wrapper with a_bound baked in as a constant."""

    def acnet_kernel(x_ref, w_trunk_ref, b_trunk_ref, w_heads_ref, b_heads_ref,
                     out_ref):
        x = x_ref[...]                                        # (tile_b, s_dim) f32

        # Fused actor+critic trunk: one MXU matmul, one full-lane ReLU.
        h = jnp.dot(x, w_trunk_ref[...],
                    preferred_element_type=jnp.float32) + b_trunk_ref[...]
        h = jnp.maximum(h, 0.0)                               # (tile_b, 384)
        # lanes [0:200)   = relu(a); [200:256) = 0 (zero-padded weights/bias)
        # lanes [256:356) = relu(c); [356:384) = 0

        # Fused heads: one narrow MXU matmul -> (tile_b, 8)
        heads = jnp.dot(h, w_heads_ref[...],
                        preferred_element_type=jnp.float32) + b_heads_ref[...]

        # lane 0 = mean pre-activation, lane 1 = log_std, lane 2 = v, rest = 0.
        # tanh + select only run over the narrow 8-lane tile (tiny EUP/VPU cost).
        lane = jax.lax.broadcasted_iota(jnp.int32, heads.shape, 1)
        out_ref[...] = jnp.where(lane == 0, a_bound * jnp.tanh(heads), heads)

    def forward(x, packed):
        B, s_dim = x.shape

        tile_b, b_pad = _pick_batch_tiling(B)
        if b_pad != B:
            x = jnp.pad(x, ((0, b_pad - B), (0, 0)))
        grid = (b_pad // tile_b,)

        out = pl.pallas_call(
            acnet_kernel,
            out_shape=jax.ShapeDtypeStruct((b_pad, N_OUT), jnp.float32),
            grid=grid,
            in_specs=[
                pl.BlockSpec((tile_b, s_dim), lambda i: (i, 0)),       # x
                pl.BlockSpec((s_dim, H_TRUNK), lambda i: (0, 0)),      # W trunk
                pl.BlockSpec((1, H_TRUNK), lambda i: (0, 0)),          # b trunk
                pl.BlockSpec((H_TRUNK, N_OUT), lambda i: (0, 0)),      # W heads
                pl.BlockSpec((1, N_OUT), lambda i: (0, 0)),            # b heads
            ],
            out_specs=pl.BlockSpec((tile_b, N_OUT), lambda i: (i, 0)),
            compiler_params=pltpu.CompilerParams(
                dimension_semantics=("parallel",)),
        )(x, packed["w_trunk"], packed["b_trunk"],
          packed["w_heads"], packed["b_heads"])

        mean = out[:B, 0:1]
        log_std = out[:B, 1:2]
        v = out[:B, 2:3]
        return mean, log_std, v

    return forward


# ---- parameter construction / packing ---------------------------------------

def init_params(key, s_dim):
    """Deterministic synthetic parameters, shapes from ACNet.__init__.

    Weights stored as (in_features, out_features); biases as (1, out).
    """
    ks = jax.random.split(key, 10)

    def lin(kw, kb, fan_in, fan_out):
        bound = 1.0 / jnp.sqrt(jnp.float32(fan_in))
        w = jax.random.uniform(kw, (fan_in, fan_out), jnp.float32, -bound, bound)
        b = jax.random.uniform(kb, (1, fan_out), jnp.float32, -bound, bound)
        return w, b

    w_a1, b_a1 = lin(ks[0], ks[1], s_dim, H_A)
    w_mean, b_mean = lin(ks[2], ks[3], H_A, 1)
    w_ls, b_ls = lin(ks[4], ks[5], H_A, 1)
    w_c1, b_c1 = lin(ks[6], ks[7], s_dim, H_C)
    w_v, b_v = lin(ks[8], ks[9], H_C, 1)
    return {
        "w_a1": w_a1, "b_a1": b_a1,
        "w_mean": w_mean, "b_mean": b_mean,
        "w_ls": w_ls, "b_ls": b_ls,
        "w_c1": w_c1, "b_c1": b_c1,
        "w_v": w_v, "b_v": b_v,
    }


def pack_params(params, s_dim):
    """Pack the 10 PyTorch-shaped tensors into 4 zero-padded slabs.

    Padded weight columns and bias lanes are EXACTLY zero so the fused kernel's
    sliced outputs match the unfused math.
    """
    # Fused trunk: columns [0:200) = Wa1, [256:356) = Wc1, rest zero.
    w_trunk = jnp.zeros((s_dim, H_TRUNK), jnp.float32)
    w_trunk = w_trunk.at[:, :H_A].set(params["w_a1"])
    w_trunk = w_trunk.at[:, H_A_PAD:H_A_PAD + H_C].set(params["w_c1"])

    b_trunk = jnp.zeros((1, H_TRUNK), jnp.float32)
    b_trunk = b_trunk.at[:, :H_A].set(params["b_a1"])
    b_trunk = b_trunk.at[:, H_A_PAD:H_A_PAD + H_C].set(params["b_c1"])

    # Fused heads (narrow, 8 lanes): lane 0 <- mean head (rows 0:200),
    # lane 1 <- log_std head (rows 0:200), lane 2 <- value head (rows 256:356),
    # lanes 3..7 and all padded rows stay zero.
    w_heads = jnp.zeros((H_TRUNK, N_OUT), jnp.float32)
    w_heads = w_heads.at[:H_A, 0:1].set(params["w_mean"])
    w_heads = w_heads.at[:H_A, 1:2].set(params["w_ls"])
    w_heads = w_heads.at[H_A_PAD:H_A_PAD + H_C, 2:3].set(params["w_v"])

    b_heads = jnp.zeros((1, N_OUT), jnp.float32)
    b_heads = b_heads.at[0, 0].set(params["b_mean"][0, 0])
    b_heads = b_heads.at[0, 1].set(params["b_ls"][0, 0])
    b_heads = b_heads.at[0, 2].set(params["b_v"][0, 0])

    return {"w_trunk": w_trunk, "b_trunk": b_trunk,
            "w_heads": w_heads, "b_heads": b_heads}


def reference_forward(x, params, a_bound):
    a = jnp.maximum(x @ params["w_a1"] + params["b_a1"], 0.0)
    mean = a_bound * jnp.tanh(a @ params["w_mean"] + params["b_mean"])
    log_std = a @ params["w_ls"] + params["b_ls"]
    c = jnp.maximum(x @ params["w_c1"] + params["b_c1"], 0.0)
    v = c @ params["w_v"] + params["b_v"]
    return mean, log_std, v


if __name__ == "__main__":
    S_DIM = 16     # state dimension
    A_BOUND = 2.0
    BATCH = 8

    key = jax.random.PRNGKey(0)
    k_params, k_x = jax.random.split(key)

    params = init_params(k_params, S_DIM)
    packed = pack_params(params, S_DIM)
    x = jax.random.normal(k_x, (BATCH, S_DIM), jnp.float32)

    forward = jax.jit(make_acnet_forward(A_BOUND))
    mean, log_std, v = forward(x, packed)
    jax.block_until_ready((mean, log_std, v))

    # Sanity check against a plain-JAX reference of the unfused math.
    ref_mean, ref_log_std, ref_v = reference_forward(x, params, A_BOUND)
    assert mean.shape == (BATCH, 1) and log_std.shape == (BATCH, 1) and v.shape == (BATCH, 1)
    assert jnp.allclose(mean, ref_mean, atol=1e-5, rtol=1e-5)
    assert jnp.allclose(log_std, ref_log_std, atol=1e-5, rtol=1e-5)
    assert jnp.allclose(v, ref_v, atol=1e-5, rtol=1e-5)

    # TODO(synk): choose_action's Normal sampling and loss_critic are host-side
    # training utilities, not part of the forward graph, so they stay in JAX.

    print("KERNEL_OK")
</pallas_src>

<mosaic_0001>
module attributes {stable_mosaic.version = 11 : i64} {
  func.func @acnet_kernel(%arg0: i32, %arg1: memref<8x16xf32, #tpu.memory_space<vmem>>, %arg2: memref<16x384xf32, #tpu.memory_space<vmem>>, %arg3: memref<1x384xf32, #tpu.memory_space<vmem>>, %arg4: memref<384x8xf32, #tpu.memory_space<vmem>>, %arg5: memref<1x8xf32, #tpu.memory_space<vmem>>, %arg6: memref<8x8xf32, #tpu.memory_space<vmem>>) attributes {dimension_semantics = [#tpu.dimension_semantics<parallel>], iteration_bounds = array<i64: 1>, scalar_prefetch = 0 : i64, scratch_operands = 0 : i64, tpu.core_type = #tpu.core_type<tc>, window_params = [{transform_indices = @transform_0, window_bounds = array<i64: 8, 16>}, {pipeline_mode = #tpu.pipeline_mode<synchronous>, transform_indices = @transform_1, window_bounds = array<i64: 16, 384>}, {pipeline_mode = #tpu.pipeline_mode<synchronous>, transform_indices = @transform_2, window_bounds = array<i64: 1, 384>}, {pipeline_mode = #tpu.pipeline_mode<synchronous>, transform_indices = @transform_3, window_bounds = array<i64: 384, 8>}, {pipeline_mode = #tpu.pipeline_mode<synchronous>, transform_indices = @transform_4, window_bounds = array<i64: 1, 8>}, {transform_indices = @transform_5, window_bounds = array<i64: 8, 8>}]} {
    %c0 = arith.constant 0 : index
    %c0_0 = arith.constant 0 : index
    %0 = vector.load %arg1[%c0, %c0_0] : memref<8x16xf32, #tpu.memory_space<vmem>>, vector<8x16xf32>
    %c0_1 = arith.constant 0 : index
    %c0_2 = arith.constant 0 : index
    %1 = vector.load %arg2[%c0_1, %c0_2] : memref<16x384xf32, #tpu.memory_space<vmem>>, vector<16x384xf32>
    %cst = arith.constant dense<0.000000e+00> : vector<8x384xf32>
    %2 = tpu.matmul %0, %1, %cst {dimension_numbers = #tpu.dot_dimension_numbers<[1], [0], [0], [1], [0, 0, 1, 1], [], []>} : vector<8x16xf32>, vector<16x384xf32>, vector<8x384xf32> -> vector<8x384xf32>
    %c0_3 = arith.constant 0 : index
    %c0_4 = arith.constant 0 : index
    %3 = vector.load %arg3[%c0_3, %c0_4] : memref<1x384xf32, #tpu.memory_space<vmem>>, vector<1x384xf32>
    %4 = vector.broadcast %3 : vector<1x384xf32> to vector<8x384xf32>
    %5 = arith.addf %2, %4 : vector<8x384xf32>
    %cst_5 = arith.constant 0.000000e+00 : f32
    %6 = vector.broadcast %cst_5 : f32 to vector<8x384xf32>
    %7 = arith.maximumf %5, %6 : vector<8x384xf32>
    %c0_6 = arith.constant 0 : index
    %c0_7 = arith.constant 0 : index
    %8 = vector.load %arg4[%c0_6, %c0_7] : memref<384x8xf32, #tpu.memory_space<vmem>>, vector<384x8xf32>
    %cst_8 = arith.constant dense<0.000000e+00> : vector<8x8xf32>
    %9 = tpu.matmul %7, %8, %cst_8 {dimension_numbers = #tpu.dot_dimension_numbers<[1], [0], [0], [1], [0, 0, 1, 1], [], []>} : vector<8x384xf32>, vector<384x8xf32>, vector<8x8xf32> -> vector<8x8xf32>
    %c0_9 = arith.constant 0 : index
    %c0_10 = arith.constant 0 : index
    %10 = vector.load %arg5[%c0_9, %c0_10] : memref<1x8xf32, #tpu.memory_space<vmem>>, vector<1x8xf32>
    %11 = vector.broadcast %10 : vector<1x8xf32> to vector<8x8xf32>
    %12 = arith.addf %9, %11 : vector<8x8xf32>
    %13 = tpu.iota {dimensions = array<i32: 1>} : vector<8x8xi32>
    %c0_i32 = arith.constant 0 : i32
    %14 = vector.broadcast %c0_i32 : i32 to vector<8x8xi32>
    %15 = arith.cmpi eq, %13, %14 : vector<8x8xi32>
    %16 = math.tanh %12 : vector<8x8xf32>
    %cst_11 = arith.constant 2.000000e+00 : f32
    %17 = vector.broadcast %cst_11 : f32 to vector<8x8xf32>
    %18 = arith.mulf %17, %16 : vector<8x8xf32>
    %19 = arith.select %15, %18, %12 : vector<8x8xi1>, vector<8x8xf32>
    %c0_12 = arith.constant 0 : index
    %c0_13 = arith.constant 0 : index
    %20 = vector.load %arg6[%c0_12, %c0_13] : memref<8x8xf32, #tpu.memory_space<vmem>>, vector<8x8xf32>
    tpu.vector_store %arg6[%c0_12, %c0_13], %19 {strides = array<i32>} : memref<8x8xf32, #tpu.memory_space<vmem>>, vector<8x8xf32>,
    return
  }
  func.func @transform_0(%arg0: i32) -> (i32, i32) {
    %c0_i32 = arith.constant 0 : i32
    %c0_i32_0 = arith.constant 0 : i32
    return %arg0, %c0_i32 : i32, i32
  }
  func.func @transform_1(%arg0: i32) -> (i32, i32) {
    %c0_i32 = arith.constant 0 : i32
    %c0_i32_0 = arith.constant 0 : i32
    %c0_i32_1 = arith.constant 0 : i32
    return %c0_i32, %c0_i32_0 : i32, i32
  }
  func.func @transform_2(%arg0: i32) -> (i32, i32) {
    %c0_i32 = arith.constant 0 : i32
    %c0_i32_0 = arith.constant 0 : i32
    %c0_i32_1 = arith.constant 0 : i32
    return %c0_i32, %c0_i32_0 : i32, i32
  }
  func.func @transform_3(%arg0: i32) -> (i32, i32) {
    %c0_i32 = arith.constant 0 : i32
    %c0_i32_0 = arith.constant 0 : i32
    %c0_i32_1 = arith.constant 0 : i32
    return %c0_i32, %c0_i32_0 : i32, i32
  }
  func.func @transform_4(%arg0: i32) -> (i32, i32) {
    %c0_i32 = arith.constant 0 : i32
    %c0_i32_0 = arith.constant 0 : i32
    %c0_i32_1 = arith.constant 0 : i32
    return %c0_i32, %c0_i32_0 : i32, i32
  }
  func.func @transform_5(%arg0: i32) -> (i32, i32) {
    %c0_i32 = arith.constant 0 : i32
    %c0_i32_0 = arith.constant 0 : i32
    return %arg0, %c0_i32 : i32, i32
  }
}

</mosaic_0001>

<llo_original>
// kernel: forward.1
$region0: #{forward.1}
  #allocation0 [shape = 'u32[]', space=smem, size = 0x4, offset = 0x4, fixed_abs, tag = 'smem constant byte address 0x4 - core index']
  #allocation1 [shape = 'u32[144,128]{1,0:T(1,128)}', space=vmem, size = 0x12000, scoped, tag = 'internal scratch']
  %s0 = inlined_call_operand.vmem [shape: f32[8,16], index: 0, kind: input, shape index: {}]
  %s1 = inlined_call_operand.vmem [shape: f32[16,384], index: 1, kind: input, shape index: {}]
  %s2 = inlined_call_operand.vmem [shape: f32[1,384], index: 2, kind: input, shape index: {}]
  %s3 = inlined_call_operand.vmem [shape: f32[384,8], index: 3, kind: input, shape index: {}]
  %s4 = inlined_call_operand.vmem [shape: f32[1,8], index: 4, kind: input, shape index: {}]
  %s5 = inlined_call_operand.vmem [shape: f32[8,8], index: 5, kind: output, shape index: {}]
  %s6 = sld [smem:[#allocation0]]
  $region30: #{forward.1} parent=0
    _
  %s8 = ssub.s32 1, %s6
  %s9 = scalar_select 0, %s8, %s6
  // Predicated region
  $region2: #{forward.1} parent=0 // pred_check
    _
  $region3: #{forward.1} parent=0 // pred_check_branch
    %11 = sbr.rel (0) target = $region5
  $region4: #{forward.1} parent=0 // pred_region
    _
  $region5: #{forward.1} parent=0 // pred_fallthru
    _
  // Predicated region
  $region6: #{forward.1} parent=0 // pred_check
    _
  $region7: #{forward.1} parent=0 // pred_check_branch
    %13 = sbr.rel (0) target = $region9
  $region8: #{forward.1} parent=0 // pred_region
    _
  $region9: #{forward.1} parent=0 // pred_fallthru
    _
  // Predicated region
  $region10: #{forward.1} parent=0 // pred_check
    _
  $region11: #{forward.1} parent=0 // pred_check_branch
    %15 = sbr.rel (0) target = $region13
  $region12: #{forward.1} parent=0 // pred_region
    _
  $region13: #{forward.1} parent=0 // pred_fallthru
    _
  // Predicated region
  $region14: #{forward.1} parent=0 // pred_check
    _
  $region15: #{forward.1} parent=0 // pred_check_branch
    %17 = sbr.rel (0) target = $region17
  $region16: #{forward.1} parent=0 // pred_region
    _
  $region17: #{forward.1} parent=0 // pred_fallthru
    _
  // Predicated region
  $region18: #{forward.1} parent=0 // pred_check
    _
  $region19: #{forward.1} parent=0 // pred_check_branch
    %19 = sbr.rel (0) target = $region21
  $region20: #{forward.1} parent=0 // pred_region
    _
  $region21: #{forward.1} parent=0 // pred_fallthru
    _
  %v20 = vld [vmem:[%s0] sm:$0xff]
  %v21 = vld [vmem:[%s1] sm:$0xff]
  %v22 = vld [vmem:[%s1 + $0x8] sm:$0xff]
  %v23 = vld [vmem:[%s1 + $0x10] sm:$0xff]
  %v24 = vld [vmem:[%s1 + $0x18] sm:$0xff]
  %v25 = vld [vmem:[%s1 + $0x20] sm:$0xff]
  %v26 = vld [vmem:[%s1 + $0x28] sm:$0xff]
  %v27 = vld [vmem:[%s2] sm:$0x7]
  %v29 = vlaneseq
  %v30 = vshrl.u32 %v29, 7
  %v31 = vsub.s32 0, %v30
  %v32 = vrot.slane %v27, %v31
  %v33 = vlaneseq
  %v34 = vshrl.u32 %v33, 7
  %v35 = vsub.s32 1, %v34
  %v36 = vrot.slane %v27, %v35
  %v37 = vlaneseq
  %v38 = vshrl.u32 %v37, 7
  %v39 = vsub.s32 2, %v38
  %v40 = vrot.slane %v27, %v39
  %vm44 = vcmask 130048
  %v46 = vsel %vm44, %v20, 0
  %48 = vmatprep.subr.mxu0 %v22
  %49 = vmatpush1.msra.mxu0 %v21
  %50 = vmatprep.subr.mxu0 %v25
  %51 = vmatpush1.msra.mxu0 %v24
  %52 = vmatprep.subr.mxu0 0.0
  %53 = vmatpush1.msra.mxu0 0.0
  %54 = vmatprep.subr.mxu0 0.0
  %55 = vmatpush1.msra.mxu0 0.0
  %56 = vmatprep.subr.mxu0 0.0
  %57 = vmatpush1.msra.mxu0 0.0
  %58 = vmatprep.subr.mxu0 0.0
  %59 = vmatpush1.msra.mxu0 0.0
  %60 = vmatprep.subr.mxu0 0.0
  %61 = vmatpush1.msra.mxu0 0.0
  %62 = vmatprep.subr.mxu0 0.0
  %63 = vmatpush1.msra.mxu0 0.0
  %64 = vmatprep.subr.mxu0 0.0
  %65 = vmatpush1.msra.mxu0 0.0
  %66 = vmatprep.subr.mxu0 0.0
  %67 = vmatpush1.msra.mxu0 0.0
  %68 = vmatprep.subr.mxu0 0.0
  %69 = vmatpush1.msra.mxu0 0.0
  %70 = vmatprep.subr.mxu0 0.0
  %71 = vmatpush1.msra.mxu0 0.0
  %72 = vmatprep.subr.mxu0 0.0
  %73 = vmatpush1.msra.mxu0 0.0
  %74 = vmatprep.subr.mxu0 0.0
  %75 = vmatpush1.msra.mxu0 0.0
  %76 = vmatprep.subr.mxu0 0.0
  %77 = vmatpush1.msra.mxu0 0.0
  %78 = vmatprep.subr.mxu0 0.0
  %79 = vmatpush1.msra.mxu0 0.0
  %80 = vmatprep.subr.mxu0 0.0
  %81 = vmatpush1.msra.mxu0 0.0
  %82 = vmatprep.subr.mxu0 0.0
  %83 = vmatpush1.msra.mxu0 0.0
  %84 = vmatprep.subr.mxu0 0.0
  %85 = vmatpush1.msra.mxu0 0.0
  %86 = vmatprep.subr.mxu0 0.0
  %87 = vmatpush1.msra.mxu0 0.0
  %88 = vmatprep.subr.mxu0 0.0
  %89 = vmatpush1.msra.mxu0 0.0
  %90 = vmatprep.subr.mxu0 0.0
  %91 = vmatpush1.msra.mxu0 0.0
  %92 = vmatprep.subr.mxu0 0.0
  %93 = vmatpush1.msra.mxu0 0.0
  %94 = vmatprep.subr.mxu0 0.0
  %95 = vmatpush1.msra.mxu0 0.0
  %96 = vmatprep.subr.mxu0 0.0
  %97 = vmatpush1.msra.mxu0 0.0
  %98 = vmatprep.subr.mxu0 0.0
  %99 = vmatpush1.msra.mxu0 0.0
  %100 = vmatprep.subr.mxu0 0.0
  %101 = vmatpush1.msra.mxu0 0.0
  %102 = vmatprep.subr.mxu0 0.0
  %103 = vmatpush1.msra.mxu0 0.0
  %104 = vmatprep.subr.mxu0 0.0
  %105 = vmatpush1.msra.mxu0 0.0
  %106 = vmatprep.subr.mxu0 0.0
  %107 = vmatpush1.msra.mxu0 0.0
  %108 = vmatprep.subr.mxu0 0.0
  %109 = vmatpush1.msra.mxu0 0.0
  %110 = vmatprep.subr.mxu0 0.0
  %111 = vmatpush1.msra.mxu0 0.0
  %112 = vmatprep.mubr.f32.mxu0 0.0
  %113 = vmatmul.mubr.f32.gmra.mrb[0].mxu0 %v46
  %v114 = vpop.f32.mrb[0].mxu0
  %v115 = vadd.f32 %v32, %v114
  %v116 = vpop.f32.mrb[0].mxu0
  %v117 = vadd.f32 %v36, %v116
  %118 = vdwg.mxu0
  %119 = vmatprep.subr.mxu0 0.0
  %120 = vmatpush1.msra.mxu0 %v23
  %121 = vmatprep.subr.mxu0 0.0
  %122 = vmatpush1.msra.mxu0 %v26
  %123 = vmatprep.subr.mxu0 0.0
  %124 = vmatpush1.msra.mxu0 0.0
  %125 = vmatprep.subr.mxu0 0.0
  %126 = vmatpush1.msra.mxu0 0.0
  %127 = vmatprep.subr.mxu0 0.0
  %128 = vmatpush1.msra.mxu0 0.0
  %129 = vmatprep.subr.mxu0 0.0
  %130 = vmatpush1.msra.mxu0 0.0
  %131 = vmatprep.subr.mxu0 0.0
  %132 = vmatpush1.msra.mxu0 0.0
  %133 = vmatprep.subr.mxu0 0.0
  %134 = vmatpush1.msra.mxu0 0.0
  %135 = vmatprep.subr.mxu0 0.0
  %136 = vmatpush1.msra.mxu0 0.0
  %137 = vmatprep.subr.mxu0 0.0
  %138 = vmatpush1.msra.mxu0 0.0
  %139 = vmatprep.subr.mxu0 0.0
  %140 = vmatpush1.msra.mxu0 0.0
  %141 = vmatprep.subr.mxu0 0.0
  %142 = vmatpush1.msra.mxu0 0.0
  %143 = vmatprep.subr.mxu0 0.0
  %144 = vmatpush1.msra.mxu0 0.0
  %145 = vmatprep.subr.mxu0 0.0
  %146 = vmatpush1.msra.mxu0 0.0
  %147 = vmatprep.subr.mxu0 0.0
  %148 = vmatpush1.msra.mxu0 0.0
  %149 = vmatprep.subr.mxu0 0.0
  %150 = vmatpush1.msra.mxu0 0.0
  %151 = vmatprep.subr.mxu0 0.0
  %152 = vmatpush1.msra.mxu0 0.0
  %153 = vmatprep.subr.mxu0 0.0
  %154 = vmatpush1.msra.mxu0 0.0
  %155 = vmatprep.subr.mxu0 0.0
  %156 = vmatpush1.msra.mxu0 0.0
  %157 = vmatprep.subr.mxu0 0.0
  %158 = vmatpush1.msra.mxu0 0.0
  %159 = vmatprep.subr.mxu0 0.0
  %160 = vmatpush1.msra.mxu0 0.0
  %161 = vmatprep.subr.mxu0 0.0
  %162 = vmatpush1.msra.mxu0 0.0
  %163 = vmatprep.subr.mxu0 0.0
  %164 = vmatpush1.msra.mxu0 0.0
  %165 = vmatprep.subr.mxu0 0.0
  %166 = vmatpush1.msra.mxu0 0.0
  %167 = vmatprep.subr.mxu0 0.0
  %168 = vmatpush1.msra.mxu0 0.0
  %169 = vmatprep.subr.mxu0 0.0
  %170 = vmatpush1.msra.mxu0 0.0
  %171 = vmatprep.subr.mxu0 0.0
  %172 = vmatpush1.msra.mxu0 0.0
  %173 = vmatprep.subr.mxu0 0.0
  %174 = vmatpush1.msra.mxu0 0.0
  %175 = vmatprep.subr.mxu0 0.0
  %176 = vmatpush1.msra.mxu0 0.0
  %177 = vmatprep.subr.mxu0 0.0
  %178 = vmatpush1.msra.mxu0 0.0
  %179 = vmatprep.subr.mxu0 0.0
  %180 = vmatpush1.msra.mxu0 0.0
  %181 = vmatprep.subr.mxu0 0.0
  %182 = vmatpush1.msra.mxu0 0.0
  %183 = vmatprep.mubr.f32.mxu0 0.0
  %184 = vmatmul.mubr.f32.gmra.mrb[0].mxu0 %v46
  %v185 = vpop.f32.mrb[0].mxu0
  %v186 = vadd.f32 %v40, %v185
  %v187 = vpop.f32.mrb[0].mxu0
  %188 = vdwg.mxu0
  %v189 = vmax.f32 %v115, 0.0
  %v190 = vmax.f32 %v117, 0.0
  %v191 = vmax.f32 %v186, 0.0
  %v192 = vld [vmem:[%s3] sm:$0xff]
  %v193 = vld [vmem:[%s3 + $0x8] sm:$0xff]
  %v194 = vld [vmem:[%s3 + $0x10] sm:$0xff]
  %v195 = vld [vmem:[%s3 + $0x18] sm:$0xff]
  %v196 = vld [vmem:[%s3 + $0x20] sm:$0xff]
  %v197 = vld [vmem:[%s3 + $0x28] sm:$0xff]
  %v198 = vld [vmem:[%s3 + $0x30] sm:$0xff]
  %v199 = vld [vmem:[%s3 + $0x38] sm:$0xff]
  %v200 = vld [vmem:[%s3 + $0x40] sm:$0xff]
  %v201 = vld [vmem:[%s3 + $0x48] sm:$0xff]
  %v202 = vld [vmem:[%s3 + $0x50] sm:$0xff]
  %v203 = vld [vmem:[%s3 + $0x58] sm:$0xff]
  %v204 = vld [vmem:[%s3 + $0x60] sm:$0xff]
  %v205 = vld [vmem:[%s3 + $0x68] sm:$0xff]
  %v206 = vld [vmem:[%s3 + $0x70] sm:$0xff]
  %v207 = vld [vmem:[%s3 + $0x78] sm:$0xff]
  %v208 = vld [vmem:[%s3 + $0x80] sm:$0xff]
  %v209 = vld [vmem:[%s3 + $0x88] sm:$0xff]
  %v210 = vld [vmem:[%s3 + $0x90] sm:$0xff]
  %v211 = vld [vmem:[%s3 + $0x98] sm:$0xff]
  %v212 = vld [vmem:[%s3 + $0xa0] sm:$0xff]
  %v213 = vld [vmem:[%s3 + $0xa8] sm:$0xff]
  %v214 = vld [vmem:[%s3 + $0xb0] sm:$0xff]
  %v215 = vld [vmem:[%s3 + $0xb8] sm:$0xff]
  %v216 = vld [vmem:[%s3 + $0xc0] sm:$0xff]
  %v217 = vld [vmem:[%s3 + $0xc8] sm:$0xff]
  %v218 = vld [vmem:[%s3 + $0xd0] sm:$0xff]
  %v219 = vld [vmem:[%s3 + $0xd8] sm:$0xff]
  %v220 = vld [vmem:[%s3 + $0xe0] sm:$0xff]
  %v221 = vld [vmem:[%s3 + $0xe8] sm:$0xff]
  %v222 = vld [vmem:[%s3 + $0xf0] sm:$0xff]
  %v223 = vld [vmem:[%s3 + $0xf8] sm:$0xff]
  %v224 = vld [vmem:[%s3 + $0x100] sm:$0xff]
  %v225 = vld [vmem:[%s3 + $0x108] sm:$0xff]
  %v226 = vld [vmem:[%s3 + $0x110] sm:$0xff]
  %v227 = vld [vmem:[%s3 + $0x118] sm:$0xff]
  %v228 = vld [vmem:[%s3 + $0x120] sm:$0xff]
  %v229 = vld [vmem:[%s3 + $0x128] sm:$0xff]
  %v230 = vld [vmem:[%s3 + $0x130] sm:$0xff]
  %v231 = vld [vmem:[%s3 + $0x138] sm:$0xff]
  %v232 = vld [vmem:[%s3 + $0x140] sm:$0xff]
  %v233 = vld [vmem:[%s3 + $0x148] sm:$0xff]
  %v234 = vld [vmem:[%s3 + $0x150] sm:$0xff]
  %v235 = vld [vmem:[%s3 + $0x158] sm:$0xff]
  %v236 = vld [vmem:[%s3 + $0x160] sm:$0xff]
  %v237 = vld [vmem:[%s3 + $0x168] sm:$0xff]
  %v238 = vld [vmem:[%s3 + $0x170] sm:$0xff]
  %v239 = vld [vmem:[%s3 + $0x178] sm:$0xff]
  %v240 = vld [vmem:[%s4] sm:$0x1]
  %v242 = vlaneseq
  %v243 = vshrl.u32 %v242, 7
  %v244 = vsub.s32 0, %v243
  %v245 = vrot.slane %v240, %v244
  %247 = vmatprep.subr.mxu0 0.0
  %248 = vmatpush1.msra.mxu0 %v192
  %249 = vmatprep.subr.mxu0 0.0
  %250 = vmatpush1.msra.mxu0 %v193
  %251 = vmatprep.subr.mxu0 0.0
  %252 = vmatpush1.msra.mxu0 %v194
  %253 = vmatprep.subr.mxu0 0.0
  %254 = vmatpush1.msra.mxu0 %v195
  %255 = vmatprep.subr.mxu0 0.0
  %256 = vmatpush1.msra.mxu0 %v196
  %257 = vmatprep.subr.mxu0 0.0
  %258 = vmatpush1.msra.mxu0 %v197
  %259 = vmatprep.subr.mxu0 0.0
  %260 = vmatpush1.msra.mxu0 %v198
  %261 = vmatprep.subr.mxu0 0.0
  %262 = vmatpush1.msra.mxu0 %v199
  %263 = vmatprep.subr.mxu0 0.0
  %264 = vmatpush1.msra.mxu0 %v200
  %265 = vmatprep.subr.mxu0 0.0
  %266 = vmatpush1.msra.mxu0 %v201
  %267 = vmatprep.subr.mxu0 0.0
  %268 = vmatpush1.msra.mxu0 %v202
  %269 = vmatprep.subr.mxu0 0.0
  %270 = vmatpush1.msra.mxu0 %v203
  %271 = vmatprep.subr.mxu0 0.0
  %272 = vmatpush1.msra.mxu0 %v204
  %273 = vmatprep.subr.mxu0 0.0
  %274 = vmatpush1.msra.mxu0 %v205
  %275 = vmatprep.subr.mxu0 0.0
  %276 = vmatpush1.msra.mxu0 %v206
  %277 = vmatprep.subr.mxu0 0.0
  %278 = vmatpush1.msra.mxu0 %v207
  %279 = vmatprep.subr.mxu0 0.0
  %280 = vmatpush1.msra.mxu0 %v208
  %281 = vmatprep.subr.mxu0 0.0
  %282 = vmatpush1.msra.mxu0 %v209
  %283 = vmatprep.subr.mxu0 0.0
  %284 = vmatpush1.msra.mxu0 %v210
  %285 = vmatprep.subr.mxu0 0.0
  %286 = vmatpush1.msra.mxu0 %v211
  %287 = vmatprep.subr.mxu0 0.0
  %288 = vmatpush1.msra.mxu0 %v212
  %289 = vmatprep.subr.mxu0 0.0
  %290 = vmatpush1.msra.mxu0 %v213
  %291 = vmatprep.subr.mxu0 0.0
  %292 = vmatpush1.msra.mxu0 %v214
  %293 = vmatprep.subr.mxu0 0.0
  %294 = vmatpush1.msra.mxu0 %v215
  %295 = vmatprep.subr.mxu0 0.0
  %296 = vmatpush1.msra.mxu0 %v216
  %297 = vmatprep.subr.mxu0 0.0
  %298 = vmatpush1.msra.mxu0 %v217
  %299 = vmatprep.subr.mxu0 0.0
  %300 = vmatpush1.msra.mxu0 %v218
  %301 = vmatprep.subr.mxu0 0.0
  %302 = vmatpush1.msra.mxu0 %v219
  %303 = vmatprep.subr.mxu0 0.0
  %304 = vmatpush1.msra.mxu0 %v220
  %305 = vmatprep.subr.mxu0 0.0
  %306 = vmatpush1.msra.mxu0 %v221
  %307 = vmatprep.subr.mxu0 0.0
  %308 = vmatpush1.msra.mxu0 %v222
  %309 = vmatprep.subr.mxu0 0.0
  %310 = vmatpush1.msra.mxu0 %v223
  %311 = vmatprep.mubr.f32.mxu0 %v190
  %312 = vmatmul.mubr.f32.gmra.mrb[0].mxu0 %v189
  %v313 = vpop.f32.mrb[0].mxu0
  %v314 = vadd.f32 %v245, %v313
  %v315 = vpop.f32.mrb[0].mxu0
  %316 = vdwg.mxu0
  %317 = vmatprep.subr.mxu0 0.0
  %318 = vmatpush1.msra.mxu0 %v224
  %319 = vmatprep.subr.mxu0 0.0
  %320 = vmatpush1.msra.mxu0 %v225
  %321 = vmatprep.subr.mxu0 0.0
  %322 = vmatpush1.msra.mxu0 %v226
  %323 = vmatprep.subr.mxu0 0.0
  %324 = vmatpush1.msra.mxu0 %v227
  %325 = vmatprep.subr.mxu0 0.0
  %326 = vmatpush1.msra.mxu0 %v228
  %327 = vmatprep.subr.mxu0 0.0
  %328 = vmatpush1.msra.mxu0 %v229
  %329 = vmatprep.subr.mxu0 0.0
  %330 = vmatpush1.msra.mxu0 %v230
  %331 = vmatprep.subr.mxu0 0.0
  %332 = vmatpush1.msra.mxu0 %v231
  %333 = vmatprep.subr.mxu0 0.0
  %334 = vmatpush1.msra.mxu0 %v232
  %335 = vmatprep.subr.mxu0 0.0
  %336 = vmatpush1.msra.mxu0 %v233
  %337 = vmatprep.subr.mxu0 0.0
  %338 = vmatpush1.msra.mxu0 %v234
  %339 = vmatprep.subr.mxu0 0.0
  %340 = vmatpush1.msra.mxu0 %v235
  %341 = vmatprep.subr.mxu0 0.0
  %342 = vmatpush1.msra.mxu0 %v236
  %343 = vmatprep.subr.mxu0 0.0
  %344 = vmatpush1.msra.mxu0 %v237
  %345 = vmatprep.subr.mxu0 0.0
  %346 = vmatpush1.msra.mxu0 %v238
  %347 = vmatprep.subr.mxu0 0.0
  %348 = vmatpush1.msra.mxu0 %v239
  %349 = vmatprep.subr.mxu0 0.0
  %350 = vmatpush1.msra.mxu0 0.0
  %351 = vmatprep.subr.mxu0 0.0
  %352 = vmatpush1.msra.mxu0 0.0
  %353 = vmatprep.subr.mxu0 0.0
  %354 = vmatpush1.msra.mxu0 0.0
  %355 = vmatprep.subr.mxu0 0.0
  %356 = vmatpush1.msra.mxu0 0.0
  %357 = vmatprep.subr.mxu0 0.0
  %358 = vmatpush1.msra.mxu0 0.0
  %359 = vmatprep.subr.mxu0 0.0
  %360 = vmatpush1.msra.mxu0 0.0
  %361 = vmatprep.subr.mxu0 0.0
  %362 = vmatpush1.msra.mxu0 0.0
  %363 = vmatprep.subr.mxu0 0.0
  %364 = vmatpush1.msra.mxu0 0.0
  %365 = vmatprep.subr.mxu0 0.0
  %366 = vmatpush1.msra.mxu0 0.0
  %367 = vmatprep.subr.mxu0 0.0
  %368 = vmatpush1.msra.mxu0 0.0
  %369 = vmatprep.subr.mxu0 0.0
  %370 = vmatpush1.msra.mxu0 0.0
  %371 = vmatprep.subr.mxu0 0.0
  %372 = vmatpush1.msra.mxu0 0.0
  %373 = vmatprep.subr.mxu0 0.0
  %374 = vmatpush1.msra.mxu0 0.0
  %375 = vmatprep.subr.mxu0 0.0
  %376 = vmatpush1.msra.mxu0 0.0
  %377 = vmatprep.subr.mxu0 0.0
  %378 = vmatpush1.msra.mxu0 0.0
  %379 = vmatprep.subr.mxu0 0.0
  %380 = vmatpush1.msra.mxu0 0.0
  %381 = vmatprep.mubr.f32.mxu0 0.0
  %382 = vmatmul.mubr.f32.gmra.mrb[0].mxu0 %v191
  %v383 = vpop.f32.mrb[0].mxu0
  %v384 = vadd.f32 %v314, %v383
  %v385 = vpop.f32.mrb[0].mxu0
  %386 = vdwg.mxu0
  %v387 = vlaneseq
  %v388 = vand.u32 %v387, 127
  %vm389 = vcmp.eq.s32.totalorder %v388, 0
  %v390 = vtanh.pop %v384
  %v391 = vmul.f32 %v390, 2.0
  %v392 = vsel %vm389, %v391, %v384
  %vm393 = vcmask 64512
  %394 = vst.msk [vmem:[%s5] sm:$0xff] %vm393, %v392
  // Predicated region
  $region22: #{forward.1} parent=0 // pred_check
    _
  $region23: #{forward.1} parent=0 // pred_check_branch
    %396 = sbr.rel (0) target = $region25
  $region24: #{forward.1} parent=0 // pred_region
    _
  $region25: #{forward.1} parent=0 // pred_fallthru
    _
  // Predicated region
  $region26: #{forward.1} parent=0 // pred_check
    _
  $region27: #{forward.1} parent=0 // pred_check_branch
    %398 = sbr.rel (0) target = $region29
  $region28: #{forward.1} parent=0 // pred_region
    _
  $region29: #{forward.1} parent=0 // pred_fallthru
    _

</llo_original>
